<compile_context>
chip_gen: v6e
topology: v6e:2x2x1
jax: 0.10.0
libtpu: 0.0.40
codegen_flags: <defaults>
</compile_context>

<pallas_src>
import jax
import jax.numpy as jnp
from jax.experimental import pallas as pl
from jax.experimental.pallas import tpu as pltpu


# ------------------------------- kernel -------------------------------------
def swish_kernel(x_ref, o_ref):
    # Elementwise: one EUP transcendental (logistic) + one VPU multiply per
    # element; purely HBM-bandwidth-bound at these block sizes.
    # TODO(synk): on v7x, if the bundle dump shows sigmoid lowering to
    # exp + divide, switch to pl.reciprocal(1 + exp(-x), approx=True).
    x = x_ref[...].astype(jnp.float32)
    o_ref[...] = (x * jax.nn.sigmoid(x)).astype(o_ref.dtype)


# ------------------------------- wrapper -------------------------------------
def swish(x, *, lane_width=512, target_block_bytes=4 * 1024 * 1024,
          min_pallas_elems=32 * 1024):
    """Elementwise Swish (x * sigmoid(x)) for arbitrarily shaped inputs."""
    orig_shape = x.shape
    orig_dtype = x.dtype
    n = x.size
    if n == 0:
        return x

    # Tiny inputs: XLA's fused elementwise op beats the kernel-launch overhead.
    if n < min_pallas_elems:
        xf = x.astype(jnp.float32)
        return (xf * jax.nn.sigmoid(xf)).astype(orig_dtype)

    itemsize = jnp.dtype(orig_dtype).itemsize
    sublane = {4: 8, 2: 16, 1: 32}.get(itemsize, 8)      # dtype-aware packing

    # Lane-dense 2-D layout: (rows, lane_width) with lane_width % 128 == 0 so
    # every store is a full-width unmasked vst.
    rows = pl.cdiv(n, lane_width)
    padded_n = rows * lane_width
    flat = x.reshape(-1)
    needs_pad = padded_n != n
    if needs_pad:
        # Ragged tail: pad at most lane_width-1 elements (full-array copy only
        # in this uncommon case; the divisible case below is zero-copy).
        flat = jnp.pad(flat, (0, padded_n - n))
    x2d = flat.reshape(rows, lane_width)

    # Block sizing: ~target_block_bytes per block, rows aligned to the
    # dtype's sublane packing (or equal to the full rows dim).
    bytes_per_row = lane_width * itemsize
    target_rows = max(sublane,
                      (target_block_bytes // bytes_per_row) // sublane * sublane)
    blk_rows = min(target_rows, rows)
    if blk_rows < rows:
        blk_rows = pl.cdiv(blk_rows, sublane) * sublane   # must be sublane-aligned
    grid_n = pl.cdiv(rows, blk_rows)

    # Ensure >=2 grid steps for medium inputs so v7x's two TensorCores both
    # stream (no effect on single-TC v5e/v6e).
    if grid_n < 2 and rows >= 2 * sublane:
        blk_rows = max(sublane, pl.cdiv(pl.cdiv(rows, 2), sublane) * sublane)
        grid_n = pl.cdiv(rows, blk_rows)

    out2d = pl.pallas_call(
        swish_kernel,
        out_shape=jax.ShapeDtypeStruct((rows, lane_width), orig_dtype),
        grid_spec=pltpu.PrefetchScalarGridSpec(
            num_scalar_prefetch=0,
            grid=(grid_n,),
            in_specs=[pl.BlockSpec((blk_rows, lane_width), lambda i: (i, 0))],
            out_specs=pl.BlockSpec((blk_rows, lane_width), lambda i: (i, 0)),
        ),
        compiler_params=pltpu.CompilerParams(
            dimension_semantics=("parallel",),
            vmem_limit_bytes=32 * 1024 * 1024,
        ),
    )(x2d)

    if needs_pad:
        return out2d.reshape(-1)[:n].reshape(orig_shape)
    return out2d.reshape(orig_shape)          # zero-copy in the common case


# ------------------------------ reference -----------------------------------
def swish_ref(x):
    xf = x.astype(jnp.float32)
    return (xf * jax.nn.sigmoid(xf)).astype(x.dtype)


# --------------------------------- main --------------------------------------
if __name__ == "__main__":
    key = jax.random.PRNGKey(0)

    # Spec shape (elementwise activation module): force the Pallas path even
    # though the default wrapper would short-circuit an input this small.
    x = jax.random.normal(key, (2, 4, 16, 16), jnp.float32)
    out = jax.block_until_ready(swish(x, min_pallas_elems=0))
    ref = swish_ref(x)
    assert out.shape == x.shape
    assert out.dtype == x.dtype
    assert jnp.allclose(out, ref, atol=1e-6, rtol=1e-6)

    # Ragged shape: exercises the pad fallback, partial-last-block masking,
    # and the >=2-grid-step split.
    x2 = jax.random.normal(jax.random.PRNGKey(0), (3, 1000, 7), jnp.float32)
    out2 = jax.block_until_ready(swish(x2, min_pallas_elems=0))
    assert out2.shape == x2.shape
    assert jnp.allclose(out2, swish_ref(x2), atol=1e-6, rtol=1e-6)

    print("KERNEL_OK")
</pallas_src>

<mosaic_0001>
module attributes {stable_mosaic.version = 11 : i64} {
  func.func @swish_kernel(%arg0: i32, %arg1: memref<4x512xf32, #tpu.memory_space<vmem>>, %arg2: memref<4x512xf32, #tpu.memory_space<vmem>>) attributes {dimension_semantics = [#tpu.dimension_semantics<parallel>], iteration_bounds = array<i64: 1>, scalar_prefetch = 0 : i64, scratch_operands = 0 : i64, tpu.core_type = #tpu.core_type<tc>, window_params = [{transform_indices = @transform_0, window_bounds = array<i64: 4, 512>}, {transform_indices = @transform_1, window_bounds = array<i64: 4, 512>}]} {
    %c0 = arith.constant 0 : index
    %c0_0 = arith.constant 0 : index
    %0 = vector.load %arg1[%c0, %c0_0] : memref<4x512xf32, #tpu.memory_space<vmem>>, vector<4x512xf32>
    %1 = arith.negf %0 : vector<4x512xf32>
    %2 = math.exp %1 : vector<4x512xf32>
    %cst = arith.constant 1.000000e+00 : f32
    %3 = vector.broadcast %cst : f32 to vector<4x512xf32>
    %4 = arith.addf %3, %2 : vector<4x512xf32>
    %5 = arith.divf %3, %4 : vector<4x512xf32>
    %6 = arith.mulf %0, %5 : vector<4x512xf32>
    %c0_1 = arith.constant 0 : index
    %c0_2 = arith.constant 0 : index
    %7 = vector.load %arg2[%c0_1, %c0_2] : memref<4x512xf32, #tpu.memory_space<vmem>>, vector<4x512xf32>
    tpu.vector_store %arg2[%c0_1, %c0_2], %6 {strides = array<i32>} : memref<4x512xf32, #tpu.memory_space<vmem>>, vector<4x512xf32>,
    return
  }
  func.func @transform_0(%arg0: i32) -> (i32, i32) {
    %c0_i32 = arith.constant 0 : i32
    %c0_i32_0 = arith.constant 0 : i32
    return %arg0, %c0_i32 : i32, i32
  }
  func.func @transform_1(%arg0: i32) -> (i32, i32) {
    %c0_i32 = arith.constant 0 : i32
    %c0_i32_0 = arith.constant 0 : i32
    return %arg0, %c0_i32 : i32, i32
  }
}

</mosaic_0001>

<llo_original>
// kernel: tpu_custom_call.1
$region0: #{tpu_custom_call.1}
  #allocation0 [shape = 'u32[]', space=smem, size = 0x4, offset = 0x4, fixed_abs, tag = 'smem constant byte address 0x4 - core index']
  #allocation1 [shape = 'u32[144,128]{1,0:T(1,128)}', space=vmem, size = 0x12000, scoped, tag = 'internal scratch']
  %s0 = inlined_call_operand.hbm [shape: f32[4,512], index: 0, kind: input, shape index: {}]
  %s1 = inlined_call_operand.hbm [shape: f32[4,512], index: 1, kind: output, shape index: {}]
  %s2 = sld [smem:[#allocation0]]
  $region18: #{tpu_custom_call.1} parent=0
    _
  %s4 = ssub.s32 1, %s2
  %s5 = scalar_select 0, %s4, %s2
  $region1: #{tpu_custom_call.1} parent=0
    #allocation2 [shape = 'u8[8192]{0}', space=vmem, size = 0x2000, scoped, tag = 'input window, operand 0, single buffered']
    #allocation3 [shape = 's32[1]{0}', space=sflag, size = 0x4, scoped, tag = 'scoped memory for tpu_custom_call.1']
    #allocation4 [shape = 's32[1]{0}', space=sflag, size = 0x4, scoped, tag = 'scoped memory for tpu_custom_call.1']
    #allocation5 [shape = 'u8[8192]{0}', space=vmem, size = 0x2000, scoped, tag = 'output window, operand 0, single buffered']
    %6 = vsyncpa [#allocation3], 0
    %7 = vsyncpa [#allocation4], 0
    // Predicated region
    $region2: #{tpu_custom_call.1} parent=1 // pred_check
      _
    $region3: #{tpu_custom_call.1} parent=1 // pred_check_branch
      %9 = sbr.rel (0) target = $region5
    $region4: #{tpu_custom_call.1} parent=1 // pred_region
      %s11 = ssub.s32 256, 256
      %12 = vsyncadd [#allocation3], %s11
      %s14 = sshll.u32 [#allocation2], 4
      %s15 = int_to_ptr.vmem [resolvable:$true] %s14
      %17 = dma.hbm_to_vmem [thread:$0]  %s0, 256, %s15, [#allocation3]
    $region5: #{tpu_custom_call.1} parent=1 // pred_fallthru
      _
    // Predicated region
    $region6: #{tpu_custom_call.1} parent=1 // pred_check
      _
    $region7: #{tpu_custom_call.1} parent=1 // pred_check_branch
      %19 = sbr.rel (0) target = $region9
    $region8: #{tpu_custom_call.1} parent=1 // pred_region
      %20 = dma.done [#allocation3], 256
    $region9: #{tpu_custom_call.1} parent=1 // pred_fallthru
      _
    %v21 = vld [vmem:[#allocation2] sm:$0xff]
    %v22 = vld [vmem:[#allocation2 + $0x8] sm:$0xff]
    %v23 = vxor.u32 %v21, 2147483648
    %v24 = vxor.u32 %v22, 2147483648
    %v25 = vmul.f32 %v23, 1.442695
    %v26 = vpow.pop %v25
    %v27 = vmul.f32 %v24, 1.442695
    %v28 = vpow.pop %v27
    %v29 = vadd.f32 %v26, 1.0
    %v30 = vadd.f32 %v28, 1.0
    %v31 = vrcp.pop %v29
    %v32 = vmul.f32 1.0, %v31
    %v33 = vrcp.pop %v30
    %v34 = vmul.f32 1.0, %v33
    %v35 = vmul.f32 %v21, %v32
    %v36 = vmul.f32 %v22, %v34
    %37 = vst [vmem:[#allocation5] sm:$0xff] %v35
    %38 = vst [vmem:[#allocation5 + $0x8] sm:$0xff] %v36
    // Predicated region
    $region10: #{tpu_custom_call.1} parent=1 // pred_check
      _
    $region11: #{tpu_custom_call.1} parent=1 // pred_check_branch
      %40 = sbr.rel (0) target = $region13
    $region12: #{tpu_custom_call.1} parent=1 // pred_region
      %s42 = ssub.s32 256, 256
      %43 = vsyncadd [#allocation4], %s42
      %s45 = sshll.u32 [#allocation5], 4
      %s46 = int_to_ptr.vmem [resolvable:$true] %s45
      %48 = dma.vmem_to_hbm [thread:$0]  %s46, 256, %s1, [#allocation4]
    $region13: #{tpu_custom_call.1} parent=1 // pred_fallthru
      _
    // Predicated region
    $region14: #{tpu_custom_call.1} parent=1 // pred_check
      _
    $region15: #{tpu_custom_call.1} parent=1 // pred_check_branch
      %50 = sbr.rel (0) target = $region17
    $region16: #{tpu_custom_call.1} parent=1 // pred_region
      %51 = dma.done [#allocation4], 256
    $region17: #{tpu_custom_call.1} parent=1 // pred_fallthru
      _
    %52 = vsyncpa [#allocation3], 1
    %53 = vsyncpa [#allocation4], 1

</llo_original>
